<compile_context>
chip_gen: v7x
topology: tpu7x:2x2x1
jax: 0.10.0
libtpu: 0.0.40
codegen_flags: <defaults>
</compile_context>

<pallas_src>
import jax
import jax.numpy as jnp
from jax.experimental import pallas as pl
from jax.experimental.pallas import tpu as pltpu

BN_EPS = 1e-5        # nn.BatchNorm1d default eps
NORM_EPS = 1e-12     # F.normalize default eps


def _round_up(x, m):
    return ((x + m - 1) // m) * m


def _choose_batch_tile(batch, c, hw):
    """Batch tile: multiple of 8, sized so one x block (TB, C, HW) f32 stays
    around <= 4 MiB (Pallas double-buffers it, well under the 32 MiB default
    scoped VMEM and v7x's 64 MiB physical VMEM)."""
    row_bytes = _round_up(c, 8) * _round_up(hw, 128) * 4     # f32 VMEM tile per batch row
    tb = (4 * 1024 * 1024) // max(row_bytes, 1)
    tb = max(8, min(512, (tb // 8) * 8))
    return min(tb, _round_up(batch, 8))


def mynet_kernel(x_ref, wb_ref, bb_ref, wn_ref, bn_ref, o_ref):
    # Synthetic backbone: GAP over spatial (1/HW already folded into wb) then
    # Linear + ReLU.  x block is (TB, C, HW): HW lane-dense, C on sublanes.
    pooled = jnp.sum(x_ref[...], axis=-1)                                # (TB, C)
    feat = jnp.dot(pooled, wb_ref[...],
                   preferred_element_type=jnp.float32) + bb_ref[...]    # (TB, E)
    feat = jnp.maximum(feat, 0.0)

    # fcneck Linear(bias=False) with eval-mode BatchNorm1d folded into W + b.
    y = jnp.dot(feat, wn_ref[...],
                preferred_element_type=jnp.float32) + bn_ref[...]       # (TB, R)

    # F.normalize:  y / max(||y||, eps)  ==  y * rsqrt(max(||y||^2, eps^2)).
    ssq = jnp.sum(y * y, axis=-1, keepdims=True)
    o_ref[...] = y * jax.lax.rsqrt(jnp.maximum(ssq, NORM_EPS * NORM_EPS))


@jax.jit
def mynet_forward(x, params):
    """x: (B, C, H, W) float32. Returns L2-normalized embeddings (B, R)."""
    B, C, H, W = x.shape
    HW = H * W
    E = params["wb"].shape[1]
    R = params["wn"].shape[1]
    E_pad = _round_up(E, 128)
    R_pad = _round_up(R, 128)
    TB = _choose_batch_tile(B, C, HW)
    B_pad = _round_up(B, TB)

    # (B, C, H, W) -> (B, C, HW) is a free (contiguous) reshape; zero-pad the
    # batch up to a multiple of the batch tile.  No transpose / cast round-trip.
    x_r = x.reshape(B, C, HW)
    if B_pad != B:
        x_r = jnp.pad(x_r, ((0, B_pad - B), (0, 0), (0, 0)))

    # Fold eval-mode BatchNorm1d into the fcneck weight + bias (f32 math), and
    # fold the 1/HW of the GAP mean into the backbone weight.
    scale = params["gamma"] * jax.lax.rsqrt(params["var"] + BN_EPS)      # (1, R)
    wn_eff = params["wn"] * scale                                        # (E, R)
    bn_eff = params["beta"] - params["mean"] * scale                     # (1, R)
    wb_eff = params["wb"] * (1.0 / HW)                                   # (C, E)
    bb = params["bb"]                                                    # (1, E)

    # Pad feature dims to lane multiples (128). Padded columns stay exactly zero
    # through ReLU / matmul / L2-norm and are sliced off below.
    wb_eff = jnp.pad(wb_eff, ((0, 0), (0, E_pad - E)))
    bb = jnp.pad(bb, ((0, 0), (0, E_pad - E)))
    wn_eff = jnp.pad(wn_eff, ((0, E_pad - E), (0, R_pad - R)))
    bn_eff = jnp.pad(bn_eff, ((0, 0), (0, R_pad - R)))

    out = pl.pallas_call(
        mynet_kernel,
        out_shape=jax.ShapeDtypeStruct((B_pad, R_pad), jnp.float32),
        grid=(B_pad // TB,),
        in_specs=[
            pl.BlockSpec((TB, C, HW), lambda i: (i, 0, 0)),    # streamed input
            pl.BlockSpec((C, E_pad), lambda i: (0, 0)),        # resident weights
            pl.BlockSpec((1, E_pad), lambda i: (0, 0)),
            pl.BlockSpec((E_pad, R_pad), lambda i: (0, 0)),
            pl.BlockSpec((1, R_pad), lambda i: (0, 0)),
        ],
        out_specs=pl.BlockSpec((TB, R_pad), lambda i: (i, 0)),
        compiler_params=pltpu.CompilerParams(
            dimension_semantics=("parallel",)),
    )(x_r, wb_eff, bb, wn_eff, bn_eff)
    return out[:B, :R]


def mynet_reference(x, params):
    """Pure-JAX f32 reference with the same (unfolded) semantics."""
    B, C, H, W = x.shape
    pooled = jnp.mean(x.reshape(B, C, H * W), axis=-1)
    feat = jnp.maximum(pooled @ params["wb"] + params["bb"], 0.0)
    y = feat @ params["wn"]
    y = ((y - params["mean"]) * jax.lax.rsqrt(params["var"] + BN_EPS)
         * params["gamma"] + params["beta"])
    norm = jnp.sqrt(jnp.sum(y * y, axis=-1, keepdims=True))
    return y / jnp.maximum(norm, NORM_EPS)


def init_params(key, in_channels, embedding_dim, representation_dim):
    k1, k2 = jax.random.split(key)
    # synthetic backbone linear (kaiming-normal-ish, fan_in = in_channels)
    wb = jax.random.normal(k1, (in_channels, embedding_dim), jnp.float32) * \
        jnp.sqrt(2.0 / in_channels)
    bb = jnp.zeros((1, embedding_dim), jnp.float32)
    # fcneck: xavier_uniform on PyTorch weight (R, E) == (E, R) transposed here
    bound = jnp.sqrt(6.0 / (embedding_dim + representation_dim))
    wn = jax.random.uniform(k2, (embedding_dim, representation_dim),
                            jnp.float32, -bound, bound)
    # fcneck_bn: weight=1, bias=0 (kaiming init rule), running stats identity
    gamma = jnp.ones((1, representation_dim), jnp.float32)
    beta = jnp.zeros((1, representation_dim), jnp.float32)
    mean = jnp.zeros((1, representation_dim), jnp.float32)
    var = jnp.ones((1, representation_dim), jnp.float32)
    return dict(wb=wb, bb=bb, wn=wn, gamma=gamma, beta=beta, mean=mean, var=var)


if __name__ == "__main__":
    B, C, H, W = 2, 4, 16, 16
    embedding_dim, representation_dim = 32, 32  # num_classes unused at inference

    key = jax.random.PRNGKey(0)
    kx, kp = jax.random.split(key)
    x = jax.random.normal(kx, (B, C, H, W), jnp.float32)
    params = init_params(kp, C, embedding_dim, representation_dim)

    out = jax.block_until_ready(mynet_forward(x, params))
    ref = jax.block_until_ready(mynet_reference(x, params))

    # sanity: shape, unit-norm rows, and agreement with the pure-JAX reference
    assert out.shape == (B, representation_dim)
    norms = jnp.linalg.norm(out, axis=1)
    assert bool(jnp.all(jnp.abs(norms - 1.0) < 1e-3))
    assert bool(jnp.max(jnp.abs(out - ref)) < 5e-2)
    print("KERNEL_OK")
</pallas_src>

<mosaic_0001>
module attributes {stable_mosaic.version = 11 : i64} {
  func.func @mynet_kernel(%arg0: i32, %arg1: memref<8x4x256xf32, #tpu.memory_space<vmem>>, %arg2: memref<4x128xf32, #tpu.memory_space<vmem>>, %arg3: memref<1x128xf32, #tpu.memory_space<vmem>>, %arg4: memref<128x128xf32, #tpu.memory_space<vmem>>, %arg5: memref<1x128xf32, #tpu.memory_space<vmem>>, %arg6: memref<8x128xf32, #tpu.memory_space<vmem>>) attributes {dimension_semantics = [#tpu.dimension_semantics<parallel>], iteration_bounds = array<i64: 1>, scalar_prefetch = 0 : i64, scratch_operands = 0 : i64, tpu.core_type = #tpu.core_type<tc>, window_params = [{transform_indices = @transform_0, window_bounds = array<i64: 8, 4, 256>}, {pipeline_mode = #tpu.pipeline_mode<synchronous>, transform_indices = @transform_1, window_bounds = array<i64: 4, 128>}, {pipeline_mode = #tpu.pipeline_mode<synchronous>, transform_indices = @transform_2, window_bounds = array<i64: 1, 128>}, {pipeline_mode = #tpu.pipeline_mode<synchronous>, transform_indices = @transform_3, window_bounds = array<i64: 128, 128>}, {pipeline_mode = #tpu.pipeline_mode<synchronous>, transform_indices = @transform_4, window_bounds = array<i64: 1, 128>}, {transform_indices = @transform_5, window_bounds = array<i64: 8, 128>}]} {
    %c0 = arith.constant 0 : index
    %c0_0 = arith.constant 0 : index
    %c0_1 = arith.constant 0 : index
    %0 = vector.load %arg1[%c0, %c0_0, %c0_1] : memref<8x4x256xf32, #tpu.memory_space<vmem>>, vector<8x4x256xf32>
    %cst = arith.constant dense<0.000000e+00> : vector<8x4xf32>
    %1 = vector.multi_reduction <add>, %0, %cst [2] : vector<8x4x256xf32> to vector<8x4xf32>
    %c0_2 = arith.constant 0 : index
    %c0_3 = arith.constant 0 : index
    %2 = vector.load %arg2[%c0_2, %c0_3] : memref<4x128xf32, #tpu.memory_space<vmem>>, vector<4x128xf32>
    %cst_4 = arith.constant dense<0.000000e+00> : vector<8x128xf32>
    %3 = tpu.matmul %1, %2, %cst_4 {dimension_numbers = #tpu.dot_dimension_numbers<[1], [0], [0], [1], [0, 0, 1, 1], [], []>} : vector<8x4xf32>, vector<4x128xf32>, vector<8x128xf32> -> vector<8x128xf32>
    %c0_5 = arith.constant 0 : index
    %c0_6 = arith.constant 0 : index
    %4 = vector.load %arg3[%c0_5, %c0_6] : memref<1x128xf32, #tpu.memory_space<vmem>>, vector<1x128xf32>
    %5 = vector.broadcast %4 : vector<1x128xf32> to vector<8x128xf32>
    %6 = arith.addf %3, %5 : vector<8x128xf32>
    %cst_7 = arith.constant 0.000000e+00 : f32
    %7 = vector.broadcast %cst_7 : f32 to vector<8x128xf32>
    %8 = arith.maximumf %6, %7 : vector<8x128xf32>
    %c0_8 = arith.constant 0 : index
    %c0_9 = arith.constant 0 : index
    %9 = vector.load %arg4[%c0_8, %c0_9] : memref<128x128xf32, #tpu.memory_space<vmem>>, vector<128x128xf32>
    %cst_10 = arith.constant dense<0.000000e+00> : vector<8x128xf32>
    %10 = tpu.matmul %8, %9, %cst_10 {dimension_numbers = #tpu.dot_dimension_numbers<[1], [0], [0], [1], [0, 0, 1, 1], [], []>} : vector<8x128xf32>, vector<128x128xf32>, vector<8x128xf32> -> vector<8x128xf32>
    %c0_11 = arith.constant 0 : index
    %c0_12 = arith.constant 0 : index
    %11 = vector.load %arg5[%c0_11, %c0_12] : memref<1x128xf32, #tpu.memory_space<vmem>>, vector<1x128xf32>
    %12 = vector.broadcast %11 : vector<1x128xf32> to vector<8x128xf32>
    %13 = arith.addf %10, %12 : vector<8x128xf32>
    %14 = arith.mulf %13, %13 : vector<8x128xf32>
    %cst_13 = arith.constant dense<0.000000e+00> : vector<8xf32>
    %15 = vector.multi_reduction <add>, %14, %cst_13 [1] : vector<8x128xf32> to vector<8xf32>
    %16 = vector.shape_cast %15 : vector<8xf32> to vector<8x1xf32>
    %cst_14 = arith.constant 1.000000e-24 : f32
    %17 = vector.broadcast %cst_14 : f32 to vector<8x1xf32>
    %18 = arith.maximumf %16, %17 : vector<8x1xf32>
    %19 = math.rsqrt %18 : vector<8x1xf32>
    %20 = vector.broadcast %19 : vector<8x1xf32> to vector<8x128xf32>
    %21 = arith.mulf %13, %20 : vector<8x128xf32>
    %c0_15 = arith.constant 0 : index
    %c0_16 = arith.constant 0 : index
    %22 = vector.load %arg6[%c0_15, %c0_16] : memref<8x128xf32, #tpu.memory_space<vmem>>, vector<8x128xf32>
    tpu.vector_store %arg6[%c0_15, %c0_16], %21 {strides = array<i32>} : memref<8x128xf32, #tpu.memory_space<vmem>>, vector<8x128xf32>,
    return
  }
  func.func @transform_0(%arg0: i32) -> (i32, i32, i32) {
    %c0_i32 = arith.constant 0 : i32
    %c0_i32_0 = arith.constant 0 : i32
    %c0_i32_1 = arith.constant 0 : i32
    return %arg0, %c0_i32, %c0_i32_0 : i32, i32, i32
  }
  func.func @transform_1(%arg0: i32) -> (i32, i32) {
    %c0_i32 = arith.constant 0 : i32
    %c0_i32_0 = arith.constant 0 : i32
    %c0_i32_1 = arith.constant 0 : i32
    return %c0_i32, %c0_i32_0 : i32, i32
  }
  func.func @transform_2(%arg0: i32) -> (i32, i32) {
    %c0_i32 = arith.constant 0 : i32
    %c0_i32_0 = arith.constant 0 : i32
    %c0_i32_1 = arith.constant 0 : i32
    return %c0_i32, %c0_i32_0 : i32, i32
  }
  func.func @transform_3(%arg0: i32) -> (i32, i32) {
    %c0_i32 = arith.constant 0 : i32
    %c0_i32_0 = arith.constant 0 : i32
    %c0_i32_1 = arith.constant 0 : i32
    return %c0_i32, %c0_i32_0 : i32, i32
  }
  func.func @transform_4(%arg0: i32) -> (i32, i32) {
    %c0_i32 = arith.constant 0 : i32
    %c0_i32_0 = arith.constant 0 : i32
    %c0_i32_1 = arith.constant 0 : i32
    return %c0_i32, %c0_i32_0 : i32, i32
  }
  func.func @transform_5(%arg0: i32) -> (i32, i32) {
    %c0_i32 = arith.constant 0 : i32
    %c0_i32_0 = arith.constant 0 : i32
    return %arg0, %c0_i32 : i32, i32
  }
}

</mosaic_0001>

<llo_original>
// kernel: mynet_forward.1
$region0: #{mynet_forward.1}
  #allocation0 [shape = 'u32[]', space=smem, size = 0x4, offset = 0x4, fixed_abs, tag = 'smem constant byte address 0x4 - core index']
  #allocation1 [shape = 'u32[144,128]{1,0:T(1,128)}', space=vmem, size = 0x12000, scoped, tag = 'internal scratch']
  %s0 = inlined_call_operand.vmem [shape: f32[8,4,256], index: 0, kind: input, shape index: {}]
  %s1 = inlined_call_operand.vmem [shape: f32[4,128], index: 1, kind: input, shape index: {}]
  %s2 = inlined_call_operand.vmem [shape: f32[1,128], index: 2, kind: input, shape index: {}]
  %s3 = inlined_call_operand.vmem [shape: f32[128,128], index: 3, kind: input, shape index: {}]
  %s4 = inlined_call_operand.vmem [shape: f32[1,128], index: 4, kind: input, shape index: {}]
  %s5 = inlined_call_operand.vmem [shape: f32[8,128], index: 5, kind: output, shape index: {}]
  %s6 = sld [smem:[#allocation0]]
  $region30: #{mynet_forward.1} parent=0
    _
  %s8 = ssub.s32 1, %s6
  %s9 = scalar_select 0, %s8, %s6
  // Predicated region
  $region2: #{mynet_forward.1} parent=0 // pred_check
    _
  $region3: #{mynet_forward.1} parent=0 // pred_check_branch
    %11 = sbr.rel (0) target = $region5
  $region4: #{mynet_forward.1} parent=0 // pred_region
    _
  $region5: #{mynet_forward.1} parent=0 // pred_fallthru
    _
  // Predicated region
  $region6: #{mynet_forward.1} parent=0 // pred_check
    _
  $region7: #{mynet_forward.1} parent=0 // pred_check_branch
    %13 = sbr.rel (0) target = $region9
  $region8: #{mynet_forward.1} parent=0 // pred_region
    _
  $region9: #{mynet_forward.1} parent=0 // pred_fallthru
    _
  // Predicated region
  $region10: #{mynet_forward.1} parent=0 // pred_check
    _
  $region11: #{mynet_forward.1} parent=0 // pred_check_branch
    %15 = sbr.rel (0) target = $region13
  $region12: #{mynet_forward.1} parent=0 // pred_region
    _
  $region13: #{mynet_forward.1} parent=0 // pred_fallthru
    _
  // Predicated region
  $region14: #{mynet_forward.1} parent=0 // pred_check
    _
  $region15: #{mynet_forward.1} parent=0 // pred_check_branch
    %17 = sbr.rel (0) target = $region17
  $region16: #{mynet_forward.1} parent=0 // pred_region
    _
  $region17: #{mynet_forward.1} parent=0 // pred_fallthru
    _
  // Predicated region
  $region18: #{mynet_forward.1} parent=0 // pred_check
    _
  $region19: #{mynet_forward.1} parent=0 // pred_check_branch
    %19 = sbr.rel (0) target = $region21
  $region20: #{mynet_forward.1} parent=0 // pred_region
    _
  $region21: #{mynet_forward.1} parent=0 // pred_fallthru
    _
  %v20 = vld [vmem:[%s0] sm:$0xff]
  %v21 = vld [vmem:[%s0 + $0x8] sm:$0xff]
  %v22 = vld [vmem:[%s0 + $0x10] sm:$0xff]
  %v23 = vld [vmem:[%s0 + $0x18] sm:$0xff]
  %v24 = vld [vmem:[%s0 + $0x20] sm:$0xff]
  %v25 = vld [vmem:[%s0 + $0x28] sm:$0xff]
  %v26 = vld [vmem:[%s0 + $0x30] sm:$0xff]
  %v27 = vld [vmem:[%s0 + $0x38] sm:$0xff]
  %v36 = vcombine.high %v20, %v20
  %v37 = vcombine.high %v21, %v21
  %v38 = vcombine.high %v22, %v22
  %v39 = vcombine.high %v23, %v23
  %v40 = vcombine.high %v24, %v24
  %v41 = vcombine.high %v25, %v25
  %v42 = vcombine.high %v26, %v26
  %v43 = vcombine.high %v27, %v27
  %vm52 = vcmask 1043456
  %v53 = vsel %vm52, %v20, 0.0
  %v54 = vsel %vm52, %v36, 0.0
  %v55 = vadd.f32 %v53, %v54
  %56 = vadd.xlane.f32.xlu0 %v55
  %v57 = vpop.xlane.xlu0 %56
  %v58 = vsel %vm52, %v21, 0.0
  %v59 = vsel %vm52, %v37, 0.0
  %v60 = vadd.f32 %v58, %v59
  %61 = vadd.xlane.f32.xlu0 %v60
  %v62 = vpop.xlane.xlu0 %61
  %v63 = vsel %vm52, %v22, 0.0
  %v64 = vsel %vm52, %v38, 0.0
  %v65 = vadd.f32 %v63, %v64
  %66 = vadd.xlane.f32.xlu0 %v65
  %v67 = vpop.xlane.xlu0 %66
  %v68 = vsel %vm52, %v23, 0.0
  %v69 = vsel %vm52, %v39, 0.0
  %v70 = vadd.f32 %v68, %v69
  %71 = vadd.xlane.f32.xlu0 %v70
  %v72 = vpop.xlane.xlu0 %71
  %v73 = vsel %vm52, %v24, 0.0
  %v74 = vsel %vm52, %v40, 0.0
  %v75 = vadd.f32 %v73, %v74
  %76 = vadd.xlane.f32.xlu0 %v75
  %v77 = vpop.xlane.xlu0 %76
  %v78 = vsel %vm52, %v25, 0.0
  %v79 = vsel %vm52, %v41, 0.0
  %v80 = vadd.f32 %v78, %v79
  %81 = vadd.xlane.f32.xlu0 %v80
  %v82 = vpop.xlane.xlu0 %81
  %v83 = vsel %vm52, %v26, 0.0
  %v84 = vsel %vm52, %v42, 0.0
  %v85 = vadd.f32 %v83, %v84
  %86 = vadd.xlane.f32.xlu0 %v85
  %v87 = vpop.xlane.xlu0 %86
  %v88 = vsel %vm52, %v27, 0.0
  %v89 = vsel %vm52, %v43, 0.0
  %v90 = vadd.f32 %v88, %v89
  %91 = vadd.xlane.f32.xlu0 %v90
  %v92 = vpop.xlane.xlu0 %91
  %v93 = vld [vmem:[%s1] sm:$0xf]
  %v94 = vld [vmem:[%s2] sm:$0x1]
  %v96 = vlaneseq
  %v97 = vshrl.u32 %v96, 7
  %v98 = vsub.s32 0, %v97
  %v99 = vrot.slane %v94, %v98
  %v109 = vlaneseq
  %v110 = vand.u32 %v109, 127
  %v111 = vlaneseq
  %v112 = vshrl.u32 %v111, 7
  %v113 = vsub.s32 %v110, %v112
  %v114 = vrot.slane %v57, %v113
  %v115 = vlaneseq
  %v116 = vshrl.u32 %v115, 7
  %v117 = vsub.s32 %v110, %v116
  %v118 = vrot.slane %v62, %v117
  %v119 = vlaneseq
  %v120 = vshrl.u32 %v119, 7
  %v121 = vsub.s32 %v110, %v120
  %v122 = vrot.slane %v67, %v121
  %v123 = vlaneseq
  %v124 = vshrl.u32 %v123, 7
  %v125 = vsub.s32 %v110, %v124
  %v126 = vrot.slane %v72, %v125
  %v127 = vlaneseq
  %v128 = vshrl.u32 %v127, 7
  %v129 = vsub.s32 %v110, %v128
  %v130 = vrot.slane %v77, %v129
  %v131 = vlaneseq
  %v132 = vshrl.u32 %v131, 7
  %v133 = vsub.s32 %v110, %v132
  %v134 = vrot.slane %v82, %v133
  %v135 = vlaneseq
  %v136 = vshrl.u32 %v135, 7
  %v137 = vsub.s32 %v110, %v136
  %v138 = vrot.slane %v87, %v137
  %v139 = vlaneseq
  %v140 = vshrl.u32 %v139, 7
  %v141 = vsub.s32 %v110, %v140
  %v142 = vrot.slane %v92, %v141
  %vm143 = vcmask 1041409
  %v144 = vsel %vm143, %v118, %v114
  %vm145 = vcmask 1042434
  %v146 = vsel %vm145, %v122, %v144
  %vm147 = vcmask 1043459
  %v148 = vsel %vm147, %v126, %v146
  %vm149 = vcmask 1044484
  %v150 = vsel %vm149, %v130, %v148
  %vm151 = vcmask 1045509
  %v152 = vsel %vm151, %v134, %v150
  %vm153 = vcmask 1046534
  %v154 = vsel %vm153, %v138, %v152
  %vm155 = vcmask 1047559
  %v156 = vsel %vm155, %v142, %v154
  %vm157 = vcmask 31744
  %v158 = vsel %vm157, %v156, 0
  %v161 = vsel %vm52, %v93, 0
  %163 = vmatprep.subr.mxu0 0.0
  %164 = vmatpush1.msra.mxu0 %v161
  %165 = vmatprep.subr.mxu0 0.0
  %166 = vmatpush1.msra.mxu0 0.0
  %167 = vmatprep.subr.mxu0 0.0
  %168 = vmatpush1.msra.mxu0 0.0
  %169 = vmatprep.subr.mxu0 0.0
  %170 = vmatpush1.msra.mxu0 0.0
  %171 = vmatprep.subr.mxu0 0.0
  %172 = vmatpush1.msra.mxu0 0.0
  %173 = vmatprep.subr.mxu0 0.0
  %174 = vmatpush1.msra.mxu0 0.0
  %175 = vmatprep.subr.mxu0 0.0
  %176 = vmatpush1.msra.mxu0 0.0
  %177 = vmatprep.subr.mxu0 0.0
  %178 = vmatpush1.msra.mxu0 0.0
  %179 = vmatprep.subr.mxu0 0.0
  %180 = vmatpush1.msra.mxu0 0.0
  %181 = vmatprep.subr.mxu0 0.0
  %182 = vmatpush1.msra.mxu0 0.0
  %183 = vmatprep.subr.mxu0 0.0
  %184 = vmatpush1.msra.mxu0 0.0
  %185 = vmatprep.subr.mxu0 0.0
  %186 = vmatpush1.msra.mxu0 0.0
  %187 = vmatprep.subr.mxu0 0.0
  %188 = vmatpush1.msra.mxu0 0.0
  %189 = vmatprep.subr.mxu0 0.0
  %190 = vmatpush1.msra.mxu0 0.0
  %191 = vmatprep.subr.mxu0 0.0
  %192 = vmatpush1.msra.mxu0 0.0
  %193 = vmatprep.subr.mxu0 0.0
  %194 = vmatpush1.msra.mxu0 0.0
  %195 = vmatprep.subr.mxu0 0.0
  %196 = vmatpush1.msra.mxu0 0.0
  %197 = vmatprep.subr.mxu0 0.0
  %198 = vmatpush1.msra.mxu0 0.0
  %199 = vmatprep.subr.mxu0 0.0
  %200 = vmatpush1.msra.mxu0 0.0
  %201 = vmatprep.subr.mxu0 0.0
  %202 = vmatpush1.msra.mxu0 0.0
  %203 = vmatprep.subr.mxu0 0.0
  %204 = vmatpush1.msra.mxu0 0.0
  %205 = vmatprep.subr.mxu0 0.0
  %206 = vmatpush1.msra.mxu0 0.0
  %207 = vmatprep.subr.mxu0 0.0
  %208 = vmatpush1.msra.mxu0 0.0
  %209 = vmatprep.subr.mxu0 0.0
  %210 = vmatpush1.msra.mxu0 0.0
  %211 = vmatprep.subr.mxu0 0.0
  %212 = vmatpush1.msra.mxu0 0.0
  %213 = vmatprep.subr.mxu0 0.0
  %214 = vmatpush1.msra.mxu0 0.0
  %215 = vmatprep.subr.mxu0 0.0
  %216 = vmatpush1.msra.mxu0 0.0
  %217 = vmatprep.subr.mxu0 0.0
  %218 = vmatpush1.msra.mxu0 0.0
  %219 = vmatprep.subr.mxu0 0.0
  %220 = vmatpush1.msra.mxu0 0.0
  %221 = vmatprep.subr.mxu0 0.0
  %222 = vmatpush1.msra.mxu0 0.0
  %223 = vmatprep.subr.mxu0 0.0
  %224 = vmatpush1.msra.mxu0 0.0
  %225 = vmatprep.subr.mxu0 0.0
  %226 = vmatpush1.msra.mxu0 0.0
  %227 = vmatprep.mubr.f32.mxu0 0.0
  %228 = vmatmul.mubr.f32.gmra.mrb[0].mxu0 %v158
  %v229 = vpop.f32.mrb[0].mxu0
  %v230 = vadd.f32 %v99, %v229
  %v231 = vpop.f32.mrb[0].mxu0
  %232 = vdwg.mxu0
  %v233 = vmax.f32 %v230, 0.0
  %v234 = vld [vmem:[%s3] sm:$0xff]
  %v235 = vld [vmem:[%s3 + $0x8] sm:$0xff]
  %v236 = vld [vmem:[%s3 + $0x10] sm:$0xff]
  %v237 = vld [vmem:[%s3 + $0x18] sm:$0xff]
  %v238 = vld [vmem:[%s3 + $0x20] sm:$0xff]
  %v239 = vld [vmem:[%s3 + $0x28] sm:$0xff]
  %v240 = vld [vmem:[%s3 + $0x30] sm:$0xff]
  %v241 = vld [vmem:[%s3 + $0x38] sm:$0xff]
  %v242 = vld [vmem:[%s3 + $0x40] sm:$0xff]
  %v243 = vld [vmem:[%s3 + $0x48] sm:$0xff]
  %v244 = vld [vmem:[%s3 + $0x50] sm:$0xff]
  %v245 = vld [vmem:[%s3 + $0x58] sm:$0xff]
  %v246 = vld [vmem:[%s3 + $0x60] sm:$0xff]
  %v247 = vld [vmem:[%s3 + $0x68] sm:$0xff]
  %v248 = vld [vmem:[%s3 + $0x70] sm:$0xff]
  %v249 = vld [vmem:[%s3 + $0x78] sm:$0xff]
  %v250 = vld [vmem:[%s4] sm:$0x1]
  %v252 = vlaneseq
  %v253 = vshrl.u32 %v252, 7
  %v254 = vsub.s32 0, %v253
  %v255 = vrot.slane %v250, %v254
  %257 = vmatprep.subr.mxu0 0.0
  %258 = vmatpush1.msra.mxu0 %v234
  %259 = vmatprep.subr.mxu0 0.0
  %260 = vmatpush1.msra.mxu0 %v235
  %261 = vmatprep.subr.mxu0 0.0
  %262 = vmatpush1.msra.mxu0 %v236
  %263 = vmatprep.subr.mxu0 0.0
  %264 = vmatpush1.msra.mxu0 %v237
  %265 = vmatprep.subr.mxu0 0.0
  %266 = vmatpush1.msra.mxu0 %v238
  %267 = vmatprep.subr.mxu0 0.0
  %268 = vmatpush1.msra.mxu0 %v239
  %269 = vmatprep.subr.mxu0 0.0
  %270 = vmatpush1.msra.mxu0 %v240
  %271 = vmatprep.subr.mxu0 0.0
  %272 = vmatpush1.msra.mxu0 %v241
  %273 = vmatprep.subr.mxu0 0.0
  %274 = vmatpush1.msra.mxu0 %v242
  %275 = vmatprep.subr.mxu0 0.0
  %276 = vmatpush1.msra.mxu0 %v243
  %277 = vmatprep.subr.mxu0 0.0
  %278 = vmatpush1.msra.mxu0 %v244
  %279 = vmatprep.subr.mxu0 0.0
  %280 = vmatpush1.msra.mxu0 %v245
  %281 = vmatprep.subr.mxu0 0.0
  %282 = vmatpush1.msra.mxu0 %v246
  %283 = vmatprep.subr.mxu0 0.0
  %284 = vmatpush1.msra.mxu0 %v247
  %285 = vmatprep.subr.mxu0 0.0
  %286 = vmatpush1.msra.mxu0 %v248
  %287 = vmatprep.subr.mxu0 0.0
  %288 = vmatpush1.msra.mxu0 %v249
  %289 = vmatprep.subr.mxu0 0.0
  %290 = vmatpush1.msra.mxu0 0.0
  %291 = vmatprep.subr.mxu0 0.0
  %292 = vmatpush1.msra.mxu0 0.0
  %293 = vmatprep.subr.mxu0 0.0
  %294 = vmatpush1.msra.mxu0 0.0
  %295 = vmatprep.subr.mxu0 0.0
  %296 = vmatpush1.msra.mxu0 0.0
  %297 = vmatprep.subr.mxu0 0.0
  %298 = vmatpush1.msra.mxu0 0.0
  %299 = vmatprep.subr.mxu0 0.0
  %300 = vmatpush1.msra.mxu0 0.0
  %301 = vmatprep.subr.mxu0 0.0
  %302 = vmatpush1.msra.mxu0 0.0
  %303 = vmatprep.subr.mxu0 0.0
  %304 = vmatpush1.msra.mxu0 0.0
  %305 = vmatprep.subr.mxu0 0.0
  %306 = vmatpush1.msra.mxu0 0.0
  %307 = vmatprep.subr.mxu0 0.0
  %308 = vmatpush1.msra.mxu0 0.0
  %309 = vmatprep.subr.mxu0 0.0
  %310 = vmatpush1.msra.mxu0 0.0
  %311 = vmatprep.subr.mxu0 0.0
  %312 = vmatpush1.msra.mxu0 0.0
  %313 = vmatprep.subr.mxu0 0.0
  %314 = vmatpush1.msra.mxu0 0.0
  %315 = vmatprep.subr.mxu0 0.0
  %316 = vmatpush1.msra.mxu0 0.0
  %317 = vmatprep.subr.mxu0 0.0
  %318 = vmatpush1.msra.mxu0 0.0
  %319 = vmatprep.subr.mxu0 0.0
  %320 = vmatpush1.msra.mxu0 0.0
  %321 = vmatprep.mubr.f32.mxu0 0.0
  %322 = vmatmul.mubr.f32.gmra.mrb[0].mxu0 %v233
  %v323 = vpop.f32.mrb[0].mxu0
  %v324 = vadd.f32 %v255, %v323
  %v325 = vpop.f32.mrb[0].mxu0
  %326 = vdwg.mxu0
  %v327 = vmul.f32 %v324, %v324
  %328 = vadd.xlane.f32.xlu0 %v327
  %v329 = vpop.xlane.xlu0 %328
  %v330 = vmax.f32 %v329, 1e-24
  %v331 = vrsqrt.pop %v330
  %v332 = vmul.f32 %v324, %v331
  %333 = vst [vmem:[%s5] sm:$0xff] %v332
  // Predicated region
  $region22: #{mynet_forward.1} parent=0 // pred_check
    _
  $region23: #{mynet_forward.1} parent=0 // pred_check_branch
    %335 = sbr.rel (0) target = $region25
  $region24: #{mynet_forward.1} parent=0 // pred_region
    _
  $region25: #{mynet_forward.1} parent=0 // pred_fallthru
    _
  // Predicated region
  $region26: #{mynet_forward.1} parent=0 // pred_check
    _
  $region27: #{mynet_forward.1} parent=0 // pred_check_branch
    %337 = sbr.rel (0) target = $region29
  $region28: #{mynet_forward.1} parent=0 // pred_region
    _
  $region29: #{mynet_forward.1} parent=0 // pred_fallthru
    _

</llo_original>
